<compile_context>
chip_gen: v5e
topology: v5e:2x2
jax: 0.10.0
libtpu: 0.0.40
codegen_flags: <defaults>
</compile_context>

<pallas_src>
import functools

import jax
import jax.numpy as jnp
from jax import lax
from jax.experimental import pallas as pl
from jax.experimental.pallas import tpu as pltpu


def ngram_combined_kernel(x_ref, o_ref, *, n_gram, inv_n):
    # x_ref / o_ref blocks are (BT, L, TD): BT folded batch elements, full sequence,
    # one lane-dense hidden tile.
    bt, L, _ = x_ref.shape
    # (L, 1) iota: the compare/select broadcasts over the lane axis, keeping the
    # integer mask work minimal.
    t_idx = lax.broadcasted_iota(jnp.int32, (L, 1), 0)
    for b in range(bt):                                # static unroll over folded batches
        x = x_ref[b]                                   # (L, TD)
        acc = x.astype(jnp.float32)                    # f32 accumulator
        for i in range(1, n_gram):                     # n_gram is a static Python int
            rolled = pltpu.roll(x, shift=i, axis=0)    # cyclic shift down the seq axis (XLU)
            shifted = jnp.where(t_idx >= i, rolled, jnp.zeros_like(rolled))
            acc = acc + shifted.astype(jnp.float32)
        o_ref[b] = (acc * inv_n).astype(o_ref.dtype)   # multiply by static 1/n_gram


def _divisors_desc(n):
    return [d for d in range(n, 0, -1) if n % d == 0]


def _choose_tiles(B, L, D, itemsize, target_bytes=2 * 1024 * 1024):
    """Pick (batch_tile, hidden_tile) so blocks are lane-dense and VMEM-friendly."""
    # Hidden tile: largest divisor of D that is a multiple of 128 and fits the target;
    # if D is not lane-aligned, take the full extent (allowed by the (8,128) rule).
    if D % 128 == 0:
        cands = [d for d in _divisors_desc(D) if d % 128 == 0]
    else:
        cands = [D]
    td = cands[-1]
    for d in cands:
        td = d
        if L * d * itemsize <= target_bytes:
            break
    # Batch folding: amortize per-grid-step overhead when a single (1, L, td) slab is tiny.
    bt = 1
    for b in _divisors_desc(B):
        if b * L * td * itemsize <= 2 * target_bytes:
            bt = b
            break
    return bt, td


def ngram_combined(x, n_gram):
    B, L, D = x.shape
    itemsize = jnp.dtype(x.dtype).itemsize
    bt, td = _choose_tiles(B, L, D, itemsize)
    block_bytes = bt * L * td * itemsize
    # Room for double-buffered input + output plus compiler scratch; stays within
    # v7x's 64 MiB physical VMEM.
    vmem_limit = int(min(max(8 * block_bytes, 16 << 20), 48 << 20))

    kernel = functools.partial(ngram_combined_kernel, n_gram=n_gram, inv_n=1.0 / n_gram)
    return pl.pallas_call(
        kernel,
        out_shape=jax.ShapeDtypeStruct((B, L, D), x.dtype),
        grid_spec=pltpu.PrefetchScalarGridSpec(
            num_scalar_prefetch=0,
            grid=(B // bt, D // td),
            in_specs=[pl.BlockSpec((bt, L, td), lambda b, d: (b, 0, d))],
            out_specs=pl.BlockSpec((bt, L, td), lambda b, d: (b, 0, d)),
        ),
        compiler_params=pltpu.CompilerParams(
            dimension_semantics=("parallel", "parallel"),
            vmem_limit_bytes=vmem_limit,
        ),
    )(x)


def ngram_combined_reference(x, n_gram):
    out = x
    for i in range(1, n_gram):
        out = out + jnp.pad(x, ((0, 0), (i, 0), (0, 0)))[:, :-i, :]
    return out / n_gram


if __name__ == "__main__":
    N_GRAM = 3          # module hyperparameter (NgramCombined has no learnable weights)
    B, L, D = 2, 8, 128

    key = jax.random.PRNGKey(0)
    x = jax.random.normal(key, (B, L, D), dtype=jnp.float32)

    out = ngram_combined(x, N_GRAM)
    out = jax.block_until_ready(out)

    ref = ngram_combined_reference(x, N_GRAM)
    assert out.shape == ref.shape and out.dtype == ref.dtype
    assert jnp.allclose(out, ref, atol=1e-5, rtol=1e-5)

    print("KERNEL_OK")
</pallas_src>

<mosaic_0001>
module attributes {stable_mosaic.version = 11 : i64} {
  func.func @ngram_combined_kernel(%arg0: i32, %arg1: i32, %arg2: memref<2x8x128xf32, #tpu.memory_space<vmem>>, %arg3: memref<2x8x128xf32, #tpu.memory_space<vmem>>) attributes {dimension_semantics = [#tpu.dimension_semantics<parallel>, #tpu.dimension_semantics<parallel>], iteration_bounds = array<i64: 1, 1>, scalar_prefetch = 0 : i64, scratch_operands = 0 : i64, tpu.core_type = #tpu.core_type<tc>, window_params = [{transform_indices = @transform_0, window_bounds = array<i64: 2, 8, 128>}, {transform_indices = @transform_1, window_bounds = array<i64: 2, 8, 128>}]} {
    %0 = tpu.iota {dimensions = array<i32: 0>} : vector<8x1xi32>
    %c0 = arith.constant 0 : index
    %c0_0 = arith.constant 0 : index
    %c0_1 = arith.constant 0 : index
    %1 = vector.load %arg2[%c0, %c0_0, %c0_1] : memref<2x8x128xf32, #tpu.memory_space<vmem>>, vector<1x8x128xf32>
    %2 = vector.shape_cast %1 : vector<1x8x128xf32> to vector<8x128xf32>
    %c1_i32 = arith.constant 1 : i32
    %3 = tpu.dynamic_rotate %2 by %c1_i32 dim 0 : vector<8x128xf32>, i32 -> vector<8x128xf32>
    %c1_i32_2 = arith.constant 1 : i32
    %4 = vector.broadcast %c1_i32_2 : i32 to vector<8x1xi32>
    %5 = arith.cmpi sge, %0, %4 : vector<8x1xi32>
    %cst = arith.constant 0.000000e+00 : f32
    %6 = vector.broadcast %cst : f32 to vector<8x128xf32>
    %7 = vector.shape_cast %5 : vector<8x1xi1> to vector<8x1xi1>
    %8 = vector.broadcast %7 : vector<8x1xi1> to vector<8x128xi1>
    %9 = arith.select %8, %3, %6 : vector<8x128xi1>, vector<8x128xf32>
    %10 = arith.addf %2, %9 : vector<8x128xf32>
    %c2_i32 = arith.constant 2 : i32
    %11 = tpu.dynamic_rotate %2 by %c2_i32 dim 0 : vector<8x128xf32>, i32 -> vector<8x128xf32>
    %c2_i32_3 = arith.constant 2 : i32
    %12 = vector.broadcast %c2_i32_3 : i32 to vector<8x1xi32>
    %13 = arith.cmpi sge, %0, %12 : vector<8x1xi32>
    %cst_4 = arith.constant 0.000000e+00 : f32
    %14 = vector.broadcast %cst_4 : f32 to vector<8x128xf32>
    %15 = vector.shape_cast %13 : vector<8x1xi1> to vector<8x1xi1>
    %16 = vector.broadcast %15 : vector<8x1xi1> to vector<8x128xi1>
    %17 = arith.select %16, %11, %14 : vector<8x128xi1>, vector<8x128xf32>
    %18 = arith.addf %10, %17 : vector<8x128xf32>
    %cst_5 = arith.constant 0.333333343 : f32
    %19 = vector.broadcast %cst_5 : f32 to vector<8x128xf32>
    %20 = arith.mulf %18, %19 : vector<8x128xf32>
    %c0_6 = arith.constant 0 : index
    %c0_7 = arith.constant 0 : index
    %c0_8 = arith.constant 0 : index
    %21 = vector.load %arg3[%c0_6, %c0_7, %c0_8] : memref<2x8x128xf32, #tpu.memory_space<vmem>>, vector<1x8x128xf32>
    %22 = vector.shape_cast %21 : vector<1x8x128xf32> to vector<8x128xf32>
    %23 = vector.shape_cast %20 : vector<8x128xf32> to vector<1x8x128xf32>
    tpu.vector_store %arg3[%c0_6, %c0_7, %c0_8], %23 {strides = array<i32>} : memref<2x8x128xf32, #tpu.memory_space<vmem>>, vector<1x8x128xf32>,
    %c1 = arith.constant 1 : index
    %c0_9 = arith.constant 0 : index
    %c0_10 = arith.constant 0 : index
    %24 = vector.load %arg2[%c1, %c0_9, %c0_10] : memref<2x8x128xf32, #tpu.memory_space<vmem>>, vector<1x8x128xf32>
    %25 = vector.shape_cast %24 : vector<1x8x128xf32> to vector<8x128xf32>
    %c1_i32_11 = arith.constant 1 : i32
    %26 = tpu.dynamic_rotate %25 by %c1_i32_11 dim 0 : vector<8x128xf32>, i32 -> vector<8x128xf32>
    %c1_i32_12 = arith.constant 1 : i32
    %27 = vector.broadcast %c1_i32_12 : i32 to vector<8x1xi32>
    %28 = arith.cmpi sge, %0, %27 : vector<8x1xi32>
    %cst_13 = arith.constant 0.000000e+00 : f32
    %29 = vector.broadcast %cst_13 : f32 to vector<8x128xf32>
    %30 = vector.shape_cast %28 : vector<8x1xi1> to vector<8x1xi1>
    %31 = vector.broadcast %30 : vector<8x1xi1> to vector<8x128xi1>
    %32 = arith.select %31, %26, %29 : vector<8x128xi1>, vector<8x128xf32>
    %33 = arith.addf %25, %32 : vector<8x128xf32>
    %c2_i32_14 = arith.constant 2 : i32
    %34 = tpu.dynamic_rotate %25 by %c2_i32_14 dim 0 : vector<8x128xf32>, i32 -> vector<8x128xf32>
    %c2_i32_15 = arith.constant 2 : i32
    %35 = vector.broadcast %c2_i32_15 : i32 to vector<8x1xi32>
    %36 = arith.cmpi sge, %0, %35 : vector<8x1xi32>
    %cst_16 = arith.constant 0.000000e+00 : f32
    %37 = vector.broadcast %cst_16 : f32 to vector<8x128xf32>
    %38 = vector.shape_cast %36 : vector<8x1xi1> to vector<8x1xi1>
    %39 = vector.broadcast %38 : vector<8x1xi1> to vector<8x128xi1>
    %40 = arith.select %39, %34, %37 : vector<8x128xi1>, vector<8x128xf32>
    %41 = arith.addf %33, %40 : vector<8x128xf32>
    %cst_17 = arith.constant 0.333333343 : f32
    %42 = vector.broadcast %cst_17 : f32 to vector<8x128xf32>
    %43 = arith.mulf %41, %42 : vector<8x128xf32>
    %c1_18 = arith.constant 1 : index
    %c0_19 = arith.constant 0 : index
    %c0_20 = arith.constant 0 : index
    %44 = vector.load %arg3[%c1_18, %c0_19, %c0_20] : memref<2x8x128xf32, #tpu.memory_space<vmem>>, vector<1x8x128xf32>
    %45 = vector.shape_cast %44 : vector<1x8x128xf32> to vector<8x128xf32>
    %46 = vector.shape_cast %43 : vector<8x128xf32> to vector<1x8x128xf32>
    tpu.vector_store %arg3[%c1_18, %c0_19, %c0_20], %46 {strides = array<i32>} : memref<2x8x128xf32, #tpu.memory_space<vmem>>, vector<1x8x128xf32>,
    return
  }
  func.func @transform_0(%arg0: i32, %arg1: i32) -> (i32, i32, i32) {
    %c0_i32 = arith.constant 0 : i32
    %c0_i32_0 = arith.constant 0 : i32
    return %arg0, %c0_i32, %arg1 : i32, i32, i32
  }
  func.func @transform_1(%arg0: i32, %arg1: i32) -> (i32, i32, i32) {
    %c0_i32 = arith.constant 0 : i32
    %c0_i32_0 = arith.constant 0 : i32
    return %arg0, %c0_i32, %arg1 : i32, i32, i32
  }
}

</mosaic_0001>

<llo_original>
// kernel: tpu_custom_call.1
$region0: #{tpu_custom_call.1}
  #allocation0 [shape = 'u32[]', space=smem, size = 0x4, offset = 0x4, fixed_abs, tag = 'smem constant byte address 0x4 - core index']
  #allocation1 [shape = 'u32[72,128]{1,0:T(1,128)}', space=vmem, size = 0x9000, scoped, tag = 'internal scratch']
  %s0 = inlined_call_operand.hbm [shape: f32[2,8,128], index: 0, kind: input, shape index: {}]
  %s1 = inlined_call_operand.hbm [shape: f32[2,8,128], index: 1, kind: output, shape index: {}]
  %s2 = sld [smem:[#allocation0]]
  $region18: #{tpu_custom_call.1} parent=0
    _
  %s4 = ssub.s32 1, %s2
  %s5 = scalar_select 0, %s4, %s2
  $region1: #{tpu_custom_call.1} parent=0
    #allocation2 [shape = 'u8[8192]{0}', space=vmem, size = 0x2000, scoped, tag = 'input window, operand 0, single buffered']
    #allocation3 [shape = 's32[1]{0}', space=sflag, size = 0x4, scoped, tag = 'scoped memory for tpu_custom_call.1']
    #allocation4 [shape = 's32[1]{0}', space=sflag, size = 0x4, scoped, tag = 'scoped memory for tpu_custom_call.1']
    #allocation5 [shape = 'u8[8192]{0}', space=vmem, size = 0x2000, scoped, tag = 'output window, operand 0, single buffered']
    %6 = vsyncpa [#allocation3], 0
    %7 = vsyncpa [#allocation4], 0
    // Predicated region
    $region2: #{tpu_custom_call.1} parent=1 // pred_check
      _
    $region3: #{tpu_custom_call.1} parent=1 // pred_check_branch
      %9 = sbr.rel (0) target = $region5
    $region4: #{tpu_custom_call.1} parent=1 // pred_region
      %11 = vsyncadd [#allocation3], 0
      %s12 = sshll.u32 %s0, 4
      %s13 = int_to_ptr.hbm [resolvable:$true] %s12
      %s14 = sshll.u32 [#allocation2], 4
      %s15 = int_to_ptr.vmem [resolvable:$true] %s14
      %20 = dma.hbm_to_vmem [thread:$0]  %s13, 256, %s15, [#allocation3], 128, 128, 8
    $region5: #{tpu_custom_call.1} parent=1 // pred_fallthru
      _
    // Predicated region
    $region6: #{tpu_custom_call.1} parent=1 // pred_check
      _
    $region7: #{tpu_custom_call.1} parent=1 // pred_check_branch
      %22 = sbr.rel (0) target = $region9
    $region8: #{tpu_custom_call.1} parent=1 // pred_region
      %24 = dma.done [#allocation3], 256
    $region9: #{tpu_custom_call.1} parent=1 // pred_fallthru
      _
    %v25 = vlaneseq
    %v26 = vshrl.u32 %v25, 7
    %v27 = vld [vmem:[#allocation2] sm:$0xff]
    %v28 = vrot.slane %v27, 7
    %vm29 = vcmp.ge.s32.totalorder %v26, 1
    %v30 = vsel %vm29, 1, 0
    %vm31 = vcmp.eq.s32.totalorder %v30, 1
    %v32 = vsel %vm31, %v28, 0.0
    %v33 = vadd.f32 %v27, %v32
    %v34 = vrot.slane %v27, 6
    %vm35 = vcmp.ge.s32.totalorder %v26, 2
    %v36 = vsel %vm35, 1, 0
    %vm37 = vcmp.eq.s32.totalorder %v36, 1
    %v38 = vsel %vm37, %v34, 0.0
    %v39 = vadd.f32 %v33, %v38
    %v40 = vmul.f32 %v39, 0.33333334
    %41 = vst [vmem:[#allocation5] sm:$0xff] %v40
    %s42 = scalar_lea.vmem [#allocation2], 8
    %v43 = vld [vmem:[%s42] sm:$0xff]
    %v44 = vrot.slane %v43, 7
    %v45 = vsel %vm31, %v44, 0.0
    %v46 = vadd.f32 %v43, %v45
    %v47 = vrot.slane %v43, 6
    %v48 = vsel %vm37, %v47, 0.0
    %v49 = vadd.f32 %v46, %v48
    %v50 = vmul.f32 %v49, 0.33333334
    %s51 = scalar_lea.vmem [#allocation5], 8
    %52 = vst [vmem:[%s51] sm:$0xff] %v50
    // Predicated region
    $region10: #{tpu_custom_call.1} parent=1 // pred_check
      _
    $region11: #{tpu_custom_call.1} parent=1 // pred_check_branch
      %54 = sbr.rel (0) target = $region13
    $region12: #{tpu_custom_call.1} parent=1 // pred_region
      %56 = vsyncadd [#allocation4], 0
      %s57 = sshll.u32 [#allocation5], 4
      %s58 = int_to_ptr.vmem [resolvable:$true] %s57
      %s59 = sshll.u32 %s1, 4
      %s60 = int_to_ptr.hbm [resolvable:$true] %s59
      %65 = dma.vmem_to_hbm [thread:$0]  %s58, 256, %s60, [#allocation4], 128, 128, 8
    $region13: #{tpu_custom_call.1} parent=1 // pred_fallthru
      _
    // Predicated region
    $region14: #{tpu_custom_call.1} parent=1 // pred_check
      _
    $region15: #{tpu_custom_call.1} parent=1 // pred_check_branch
      %67 = sbr.rel (0) target = $region17
    $region16: #{tpu_custom_call.1} parent=1 // pred_region
      %69 = dma.done [#allocation4], 256
    $region17: #{tpu_custom_call.1} parent=1 // pred_fallthru
      _
    %70 = vsyncpa [#allocation3], 1
    %71 = vsyncpa [#allocation4], 1

</llo_original>
